<compile_context>
chip_gen: v7x
topology: tpu7x:2x2x1
jax: 0.10.0
libtpu: 0.0.40
codegen_flags: <defaults>
</compile_context>

<pallas_src>
import functools

import jax
import jax.numpy as jnp
from jax.experimental import pallas as pl
from jax.experimental.pallas import tpu as pltpu


def _outconv_kernel(x_ref, w_ref, b_ref, o_ref):
    # x_ref: (nb, Cin, t_hw)   w_ref: (Cout, Cin)   b_ref: (Cout, 1)
    # o_ref: (nb, Cout, t_hw)
    w = w_ref[...]
    b = b_ref[...]
    nb = x_ref.shape[0]
    for i in range(nb):  # nb is small & static -> unrolled at trace time
        acc = jnp.dot(w, x_ref[i], preferred_element_type=jnp.float32)
        o_ref[i] = (acc + b).astype(o_ref.dtype)


@functools.lru_cache(maxsize=1)
def _vmem_config():
    """Returns (vmem_limit_bytes, tile_budget_bytes, is_v7x) for the local TPU."""
    kind = ""
    try:
        kind = jax.devices()[0].device_kind.lower()
    except Exception:
        pass
    is_v7x = "7" in kind  # e.g. "tpu7x"

    phys = None
    try:
        phys = int(pltpu.get_tpu_info().vmem_capacity_bytes)
    except Exception:
        phys = None
    if phys is None or phys <= 0:
        phys = (64 << 20) if is_v7x else (128 << 20)

    # Leave headroom under physical capacity for compiler-internal scratch.
    limit = max(32 << 20, min(phys - (16 << 20), 100 << 20))
    if is_v7x:
        limit = min(limit, 48 << 20)  # 64 MiB/TC physical on v7x
    budget = int(limit * 0.85)        # what we let the tile footprint consume
    return int(limit), int(budget), is_v7x


def _largest_divisor_leq(n, cap):
    for d in range(min(cap, n), 0, -1):
        if n % d == 0:
            return d
    return 1


@jax.jit
def outconv(x_nchw, weight, bias):
    """1x1 conv (nn.Conv2d(in, out, kernel_size=1)) forward.

    x_nchw: (N, Cin, H, W)
    weight: (Cout, Cin, 1, 1)   -- PyTorch conv weight layout
    bias:   (Cout,)
    returns (N, Cout, H, W)
    """
    N, Cin, H, W = x_nchw.shape
    Cout = weight.shape[0]
    HW = H * W

    # Free reshapes only (no transposes, no pads).
    x3 = x_nchw.reshape(N, Cin, HW)   # (N, Cin, HW)
    w = weight.reshape(Cout, Cin)     # (Cout, Cin)
    b = bias.reshape(Cout, 1)         # (Cout, 1)

    vmem_limit, budget, is_v7x = _vmem_config()

    io_item = jnp.dtype(x_nchw.dtype).itemsize
    w_item = jnp.dtype(weight.dtype).itemsize

    def footprint(nb, t):
        # Double-buffered x + out tiles, f32 accumulator + cast temp, weights/bias.
        x_bytes = nb * Cin * t * io_item
        o_bytes = nb * Cout * t * io_item
        acc_bytes = 2 * nb * Cout * t * 4          # f32 acc + cast intermediate
        wb_bytes = (Cout * Cin + Cout) * w_item
        return 2 * (x_bytes + o_bytes) + acc_bytes + 2 * wb_bytes

    # ---- spatial tile: prefer the full H*W slab per step ---------------------
    t_hw = HW
    if HW > 128 and footprint(1, HW) > budget:
        t_hw = (HW // 128) * 128
        while t_hw > 128 and footprint(1, t_hw) > budget:
            t_hw = max(128, ((t_hw // 2) // 128) * 128)

    # ---- batch blocking: amortize the ~0.35us per-step cost when HW is small -
    nb = 1
    if t_hw == HW:
        target_step_bytes = 4 << 20  # aim for a few MiB of useful DMA per step
        for d in range(1, N + 1):
            if N % d:                 # even batch blocks only (no ragged N tiles)
                continue
            if footprint(d, t_hw) > budget:
                break
            nb = d
            if d * (Cin + Cout) * t_hw * io_item >= target_step_bytes:
                break

    # ---- v7x: keep >= 2 parallel grid slices so both TensorCores get work ----
    if is_v7x and pl.cdiv(N, nb) * pl.cdiv(HW, t_hw) < 2:
        if HW >= 256:
            t_hw = max(128, ((HW // 2) // 128) * 128)
        elif N >= 2:
            nb = _largest_divisor_leq(N, max(1, N // 2))

    grid = (pl.cdiv(N, nb), pl.cdiv(HW, t_hw))

    y3 = pl.pallas_call(
        _outconv_kernel,
        out_shape=jax.ShapeDtypeStruct((N, Cout, HW), x_nchw.dtype),
        grid_spec=pltpu.PrefetchScalarGridSpec(
            num_scalar_prefetch=0,
            grid=grid,
            in_specs=[
                # x block: (nb, Cin, t_hw); ragged last spatial block is safe
                # because the op is strictly columnwise (Pallas masks writeback).
                pl.BlockSpec((nb, Cin, t_hw), lambda n, s: (n, 0, s)),
                # full weight, VMEM-resident across the whole grid.
                pl.BlockSpec((Cout, Cin), lambda n, s: (0, 0)),
                # full bias, VMEM-resident across the whole grid.
                pl.BlockSpec((Cout, 1), lambda n, s: (0, 0)),
            ],
            out_specs=pl.BlockSpec((nb, Cout, t_hw), lambda n, s: (n, 0, s)),
        ),
        compiler_params=pltpu.CompilerParams(
            dimension_semantics=("parallel", "parallel"),
            vmem_limit_bytes=int(vmem_limit)),
    )(x3, w, b)

    return y3.reshape(N, Cout, H, W)


def init_outconv_params(key, in_channels, out_channels, dtype=jnp.float32):
    """Deterministic init mimicking PyTorch Conv2d default (kaiming-uniform)."""
    kw, kb = jax.random.split(key)
    fan_in = in_channels * 1 * 1
    bound = 1.0 / jnp.sqrt(float(fan_in))
    weight = jax.random.uniform(
        kw, (out_channels, in_channels, 1, 1), dtype, -bound, bound)
    bias = jax.random.uniform(kb, (out_channels,), dtype, -bound, bound)
    return weight, bias


if __name__ == "__main__":
    key = jax.random.PRNGKey(0)
    k_x, k_p = jax.random.split(key)

    N, Cin, Cout, H, W = 2, 4, 3, 16, 16
    x = jax.random.normal(k_x, (N, Cin, H, W), dtype=jnp.float32)
    weight, bias = init_outconv_params(k_p, Cin, Cout)

    y = outconv(x, weight, bias)
    y = jax.block_until_ready(y)

    # Reference check (plain JAX einsum, same semantics as nn.Conv2d k=1).
    y_ref = jnp.einsum("nchw,oc->nohw", x, weight.reshape(Cout, Cin)) \
        + bias.reshape(1, Cout, 1, 1)
    assert y.shape == (N, Cout, H, W)
    assert jnp.allclose(y, y_ref, atol=1e-5, rtol=1e-5)

    print("KERNEL_OK")
</pallas_src>

<mosaic_0001>
module attributes {stable_mosaic.version = 11 : i64} {
  func.func @_outconv_kernel(%arg0: i32, %arg1: i32, %arg2: memref<2x4x256xf32, #tpu.memory_space<vmem>>, %arg3: memref<3x4xf32, #tpu.memory_space<vmem>>, %arg4: memref<3x1xf32, #tpu.memory_space<vmem>>, %arg5: memref<2x3x256xf32, #tpu.memory_space<vmem>>) attributes {dimension_semantics = [#tpu.dimension_semantics<parallel>, #tpu.dimension_semantics<parallel>], iteration_bounds = array<i64: 1, 1>, scalar_prefetch = 0 : i64, scratch_operands = 0 : i64, tpu.core_type = #tpu.core_type<tc>, window_params = [{transform_indices = @transform_0, window_bounds = array<i64: 2, 4, 256>}, {pipeline_mode = #tpu.pipeline_mode<synchronous>, transform_indices = @transform_1, window_bounds = array<i64: 3, 4>}, {pipeline_mode = #tpu.pipeline_mode<synchronous>, transform_indices = @transform_2, window_bounds = array<i64: 3, 1>}, {transform_indices = @transform_3, window_bounds = array<i64: 2, 3, 256>}]} {
    %c0 = arith.constant 0 : index
    %c0_0 = arith.constant 0 : index
    %0 = vector.load %arg3[%c0, %c0_0] : memref<3x4xf32, #tpu.memory_space<vmem>>, vector<3x4xf32>
    %c0_1 = arith.constant 0 : index
    %c0_2 = arith.constant 0 : index
    %1 = vector.load %arg4[%c0_1, %c0_2] : memref<3x1xf32, #tpu.memory_space<vmem>>, vector<3x1xf32>
    %c0_3 = arith.constant 0 : index
    %c0_4 = arith.constant 0 : index
    %c0_5 = arith.constant 0 : index
    %2 = vector.load %arg2[%c0_3, %c0_4, %c0_5] : memref<2x4x256xf32, #tpu.memory_space<vmem>>, vector<1x4x256xf32>
    %3 = vector.shape_cast %2 : vector<1x4x256xf32> to vector<4x256xf32>
    %cst = arith.constant dense<0.000000e+00> : vector<3x256xf32>
    %4 = tpu.matmul %0, %3, %cst {dimension_numbers = #tpu.dot_dimension_numbers<[1], [0], [0], [1], [0, 0, 1, 1], [], []>} : vector<3x4xf32>, vector<4x256xf32>, vector<3x256xf32> -> vector<3x256xf32>
    %5 = vector.broadcast %1 : vector<3x1xf32> to vector<3x256xf32>
    %6 = arith.addf %4, %5 : vector<3x256xf32>
    %c0_6 = arith.constant 0 : index
    %c0_7 = arith.constant 0 : index
    %c0_8 = arith.constant 0 : index
    %7 = vector.load %arg5[%c0_6, %c0_7, %c0_8] : memref<2x3x256xf32, #tpu.memory_space<vmem>>, vector<1x3x256xf32>
    %8 = vector.shape_cast %7 : vector<1x3x256xf32> to vector<3x256xf32>
    %9 = vector.shape_cast %6 : vector<3x256xf32> to vector<1x3x256xf32>
    tpu.vector_store %arg5[%c0_6, %c0_7, %c0_8], %9 {strides = array<i32>} : memref<2x3x256xf32, #tpu.memory_space<vmem>>, vector<1x3x256xf32>,
    %c1 = arith.constant 1 : index
    %c0_9 = arith.constant 0 : index
    %c0_10 = arith.constant 0 : index
    %10 = vector.load %arg2[%c1, %c0_9, %c0_10] : memref<2x4x256xf32, #tpu.memory_space<vmem>>, vector<1x4x256xf32>
    %11 = vector.shape_cast %10 : vector<1x4x256xf32> to vector<4x256xf32>
    %cst_11 = arith.constant dense<0.000000e+00> : vector<3x256xf32>
    %12 = tpu.matmul %0, %11, %cst_11 {dimension_numbers = #tpu.dot_dimension_numbers<[1], [0], [0], [1], [0, 0, 1, 1], [], []>} : vector<3x4xf32>, vector<4x256xf32>, vector<3x256xf32> -> vector<3x256xf32>
    %13 = vector.broadcast %1 : vector<3x1xf32> to vector<3x256xf32>
    %14 = arith.addf %12, %13 : vector<3x256xf32>
    %c1_12 = arith.constant 1 : index
    %c0_13 = arith.constant 0 : index
    %c0_14 = arith.constant 0 : index
    %15 = vector.load %arg5[%c1_12, %c0_13, %c0_14] : memref<2x3x256xf32, #tpu.memory_space<vmem>>, vector<1x3x256xf32>
    %16 = vector.shape_cast %15 : vector<1x3x256xf32> to vector<3x256xf32>
    %17 = vector.shape_cast %14 : vector<3x256xf32> to vector<1x3x256xf32>
    tpu.vector_store %arg5[%c1_12, %c0_13, %c0_14], %17 {strides = array<i32>} : memref<2x3x256xf32, #tpu.memory_space<vmem>>, vector<1x3x256xf32>,
    return
  }
  func.func @transform_0(%arg0: i32, %arg1: i32) -> (i32, i32, i32) {
    %c0_i32 = arith.constant 0 : i32
    %c0_i32_0 = arith.constant 0 : i32
    return %arg0, %c0_i32, %arg1 : i32, i32, i32
  }
  func.func @transform_1(%arg0: i32, %arg1: i32) -> (i32, i32) {
    %c0_i32 = arith.constant 0 : i32
    %c0_i32_0 = arith.constant 0 : i32
    %c0_i32_1 = arith.constant 0 : i32
    return %c0_i32, %c0_i32_0 : i32, i32
  }
  func.func @transform_2(%arg0: i32, %arg1: i32) -> (i32, i32) {
    %c0_i32 = arith.constant 0 : i32
    %c0_i32_0 = arith.constant 0 : i32
    %c0_i32_1 = arith.constant 0 : i32
    return %c0_i32, %c0_i32_0 : i32, i32
  }
  func.func @transform_3(%arg0: i32, %arg1: i32) -> (i32, i32, i32) {
    %c0_i32 = arith.constant 0 : i32
    %c0_i32_0 = arith.constant 0 : i32
    return %arg0, %c0_i32, %arg1 : i32, i32, i32
  }
}

</mosaic_0001>

<llo_original>
// kernel: outconv.1
$region0: #{outconv.1}
  #allocation0 [shape = 'u32[]', space=smem, size = 0x4, offset = 0x4, fixed_abs, tag = 'smem constant byte address 0x4 - core index']
  #allocation1 [shape = 'u32[144,128]{1,0:T(1,128)}', space=vmem, size = 0x12000, scoped, tag = 'internal scratch']
  %s0 = inlined_call_operand.hbm [shape: f32[2,4,256], index: 0, kind: input, shape index: {}]
  %s1 = inlined_call_operand.hbm [shape: f32[3,4], index: 1, kind: input, shape index: {}]
  %s2 = inlined_call_operand.hbm [shape: f32[3,1], index: 2, kind: input, shape index: {}]
  %s3 = inlined_call_operand.hbm [shape: f32[2,3,256], index: 3, kind: output, shape index: {}]
  %s4 = sld [smem:[#allocation0]]
  $region34: #{outconv.1} parent=0
    _
  %s6 = ssub.s32 1, %s4
  %s7 = scalar_select 0, %s6, %s4
  $region1: #{outconv.1} parent=0
    #allocation2 [shape = 'u8[8192]{0}', space=vmem, size = 0x2000, scoped, tag = 'input window, operand 0, single buffered']
    #allocation3 [shape = 's32[1]{0}', space=sflag, size = 0x4, scoped, tag = 'scoped memory for outconv.1']
    #allocation4 [shape = 's32[1]{0}', space=sflag, size = 0x4, scoped, tag = 'scoped memory for outconv.1']
    #allocation5 [shape = 'u8[2048]{0}', space=vmem, size = 0x800, scoped, tag = 'input window, operand 1, single buffered']
    #allocation6 [shape = 's32[1]{0}', space=sflag, size = 0x4, scoped, tag = 'scoped memory for outconv.1']
    #allocation7 [shape = 'u8[2048]{0}', space=vmem, size = 0x800, scoped, tag = 'input window, operand 2, single buffered']
    #allocation8 [shape = 'u8[8192]{0}', space=vmem, size = 0x2000, scoped, tag = 'output window, operand 0, single buffered']
    %8 = vsyncpa [#allocation3], 0
    %9 = vsyncpa [#allocation6], 0
    %10 = vsyncpa [#allocation4], 0
    // Predicated region
    $region2: #{outconv.1} parent=1 // pred_check
      _
    $region3: #{outconv.1} parent=1 // pred_check_branch
      %12 = sbr.rel (0) target = $region5
    $region4: #{outconv.1} parent=1 // pred_region
      %s14 = ssub.s32 256, 256
      %15 = vsyncadd [#allocation3], %s14
      %s16 = sshll.u32 [#allocation2], 4
      %s17 = int_to_ptr.vmem [resolvable:$true] %s16
      %22 = dma.hbm_to_vmem [thread:$0]  %s0, 256, %s17, [#allocation3], 128, 128, 8
    $region5: #{outconv.1} parent=1 // pred_fallthru
      _
    // Predicated region
    $region6: #{outconv.1} parent=1 // pred_check
      _
    $region7: #{outconv.1} parent=1 // pred_check_branch
      %24 = sbr.rel (0) target = $region9
    $region8: #{outconv.1} parent=1 // pred_region
      %s26 = ssub.s32 64, 64
      %27 = vsyncadd [#allocation6], %s26
      %s29 = sshll.u32 [#allocation5], 4
      %s30 = int_to_ptr.vmem [resolvable:$true] %s29
      %32 = dma.hbm_to_vmem [thread:$0]  %s1, 64, %s30, [#allocation6]
    $region9: #{outconv.1} parent=1 // pred_fallthru
      _
    // Predicated region
    $region10: #{outconv.1} parent=1 // pred_check
      _
    $region11: #{outconv.1} parent=1 // pred_check_branch
      %34 = sbr.rel (0) target = $region13
    $region12: #{outconv.1} parent=1 // pred_region
      %s36 = ssub.s32 64, 64
      %37 = vsyncadd [#allocation6], %s36
      %s39 = sshll.u32 [#allocation7], 4
      %s40 = int_to_ptr.vmem [resolvable:$true] %s39
      %42 = dma.hbm_to_vmem [thread:$0]  %s2, 64, %s40, [#allocation6]
    $region13: #{outconv.1} parent=1 // pred_fallthru
      _
    // Predicated region
    $region14: #{outconv.1} parent=1 // pred_check
      _
    $region15: #{outconv.1} parent=1 // pred_check_branch
      %44 = sbr.rel (0) target = $region17
    $region16: #{outconv.1} parent=1 // pred_region
      %45 = dma.done [#allocation3], 256
    $region17: #{outconv.1} parent=1 // pred_fallthru
      _
    // Predicated region
    $region18: #{outconv.1} parent=1 // pred_check
      _
    $region19: #{outconv.1} parent=1 // pred_check_branch
      %47 = sbr.rel (0) target = $region21
    $region20: #{outconv.1} parent=1 // pred_region
      %48 = dma.done [#allocation6], 64
    $region21: #{outconv.1} parent=1 // pred_fallthru
      _
    // Predicated region
    $region22: #{outconv.1} parent=1 // pred_check
      _
    $region23: #{outconv.1} parent=1 // pred_check_branch
      %50 = sbr.rel (0) target = $region25
    $region24: #{outconv.1} parent=1 // pred_region
      %51 = dma.done [#allocation6], 64
    $region25: #{outconv.1} parent=1 // pred_fallthru
      _
    %v52 = vld [vmem:[#allocation5] sm:$0x7]
    %v53 = vld [vmem:[#allocation7] sm:$0x7]
    %v54 = vld [vmem:[#allocation2] sm:$0xff]
    %56 = vset.pattern.permute.xlu0 0
    %57 = vperm.xlu0 %56, %v53
    %v58 = vpop.permute.xlu0 %57
    %v61 = vcombine.high %v54, %v54
    %vm62 = vcmask 31744
    %v64 = vsel %vm62, %v52, 0
    %vm66 = vcmask 1043456
    %v67 = vsel %vm66, %v54, 0
    %v69 = vsel %vm66, %v61, 0
    %71 = vmatprep.subr.mxu0 %v69
    %72 = vmatpush1.msra.mxu0 %v67
    %73 = vmatprep.subr.mxu0 0.0
    %74 = vmatpush1.msra.mxu0 0.0
    %75 = vmatprep.subr.mxu0 0.0
    %76 = vmatpush1.msra.mxu0 0.0
    %77 = vmatprep.subr.mxu0 0.0
    %78 = vmatpush1.msra.mxu0 0.0
    %79 = vmatprep.subr.mxu0 0.0
    %80 = vmatpush1.msra.mxu0 0.0
    %81 = vmatprep.subr.mxu0 0.0
    %82 = vmatpush1.msra.mxu0 0.0
    %83 = vmatprep.subr.mxu0 0.0
    %84 = vmatpush1.msra.mxu0 0.0
    %85 = vmatprep.subr.mxu0 0.0
    %86 = vmatpush1.msra.mxu0 0.0
    %87 = vmatprep.subr.mxu0 0.0
    %88 = vmatpush1.msra.mxu0 0.0
    %89 = vmatprep.subr.mxu0 0.0
    %90 = vmatpush1.msra.mxu0 0.0
    %91 = vmatprep.subr.mxu0 0.0
    %92 = vmatpush1.msra.mxu0 0.0
    %93 = vmatprep.subr.mxu0 0.0
    %94 = vmatpush1.msra.mxu0 0.0
    %95 = vmatprep.subr.mxu0 0.0
    %96 = vmatpush1.msra.mxu0 0.0
    %97 = vmatprep.subr.mxu0 0.0
    %98 = vmatpush1.msra.mxu0 0.0
    %99 = vmatprep.subr.mxu0 0.0
    %100 = vmatpush1.msra.mxu0 0.0
    %101 = vmatprep.subr.mxu0 0.0
    %102 = vmatpush1.msra.mxu0 0.0
    %103 = vmatprep.subr.mxu0 0.0
    %104 = vmatpush1.msra.mxu0 0.0
    %105 = vmatprep.subr.mxu0 0.0
    %106 = vmatpush1.msra.mxu0 0.0
    %107 = vmatprep.subr.mxu0 0.0
    %108 = vmatpush1.msra.mxu0 0.0
    %109 = vmatprep.subr.mxu0 0.0
    %110 = vmatpush1.msra.mxu0 0.0
    %111 = vmatprep.subr.mxu0 0.0
    %112 = vmatpush1.msra.mxu0 0.0
    %113 = vmatprep.subr.mxu0 0.0
    %114 = vmatpush1.msra.mxu0 0.0
    %115 = vmatprep.subr.mxu0 0.0
    %116 = vmatpush1.msra.mxu0 0.0
    %117 = vmatprep.subr.mxu0 0.0
    %118 = vmatpush1.msra.mxu0 0.0
    %119 = vmatprep.subr.mxu0 0.0
    %120 = vmatpush1.msra.mxu0 0.0
    %121 = vmatprep.subr.mxu0 0.0
    %122 = vmatpush1.msra.mxu0 0.0
    %123 = vmatprep.subr.mxu0 0.0
    %124 = vmatpush1.msra.mxu0 0.0
    %125 = vmatprep.subr.mxu0 0.0
    %126 = vmatpush1.msra.mxu0 0.0
    %127 = vmatprep.subr.mxu0 0.0
    %128 = vmatpush1.msra.mxu0 0.0
    %129 = vmatprep.subr.mxu0 0.0
    %130 = vmatpush1.msra.mxu0 0.0
    %131 = vmatprep.subr.mxu0 0.0
    %132 = vmatpush1.msra.mxu0 0.0
    %133 = vmatprep.subr.mxu0 0.0
    %134 = vmatpush1.msra.mxu0 0.0
    %135 = vmatprep.mubr.f32.mxu0 0.0
    %136 = vmatmul.mubr.f32.gmra.mrb[0].mxu0 %v64
    %v137 = vpop.f32.mrb[0].mxu0
    %v138 = vadd.f32 %v58, %v137
    %v139 = vpop.f32.mrb[0].mxu0
    %v140 = vadd.f32 %v58, %v139
    %141 = vdwg.mxu0
    %v144 = vcombine.low %v138, %v140
    %146 = vst [vmem:[#allocation8] sm:$0x77] %v144
    %s147 = scalar_lea.vmem [#allocation2], 8
    %v148 = vld [vmem:[%s147] sm:$0xff]
    %v150 = vcombine.high %v148, %v148
    %v151 = vsel %vm66, %v148, 0
    %v153 = vsel %vm66, %v150, 0
    %155 = vmatprep.subr.mxu0 %v153
    %156 = vmatpush1.msra.mxu0 %v151
    %157 = vmatprep.subr.mxu0 0.0
    %158 = vmatpush1.msra.mxu0 0.0
    %159 = vmatprep.subr.mxu0 0.0
    %160 = vmatpush1.msra.mxu0 0.0
    %161 = vmatprep.subr.mxu0 0.0
    %162 = vmatpush1.msra.mxu0 0.0
    %163 = vmatprep.subr.mxu0 0.0
    %164 = vmatpush1.msra.mxu0 0.0
    %165 = vmatprep.subr.mxu0 0.0
    %166 = vmatpush1.msra.mxu0 0.0
    %167 = vmatprep.subr.mxu0 0.0
    %168 = vmatpush1.msra.mxu0 0.0
    %169 = vmatprep.subr.mxu0 0.0
    %170 = vmatpush1.msra.mxu0 0.0
    %171 = vmatprep.subr.mxu0 0.0
    %172 = vmatpush1.msra.mxu0 0.0
    %173 = vmatprep.subr.mxu0 0.0
    %174 = vmatpush1.msra.mxu0 0.0
    %175 = vmatprep.subr.mxu0 0.0
    %176 = vmatpush1.msra.mxu0 0.0
    %177 = vmatprep.subr.mxu0 0.0
    %178 = vmatpush1.msra.mxu0 0.0
    %179 = vmatprep.subr.mxu0 0.0
    %180 = vmatpush1.msra.mxu0 0.0
    %181 = vmatprep.subr.mxu0 0.0
    %182 = vmatpush1.msra.mxu0 0.0
    %183 = vmatprep.subr.mxu0 0.0
    %184 = vmatpush1.msra.mxu0 0.0
    %185 = vmatprep.subr.mxu0 0.0
    %186 = vmatpush1.msra.mxu0 0.0
    %187 = vmatprep.subr.mxu0 0.0
    %188 = vmatpush1.msra.mxu0 0.0
    %189 = vmatprep.subr.mxu0 0.0
    %190 = vmatpush1.msra.mxu0 0.0
    %191 = vmatprep.subr.mxu0 0.0
    %192 = vmatpush1.msra.mxu0 0.0
    %193 = vmatprep.subr.mxu0 0.0
    %194 = vmatpush1.msra.mxu0 0.0
    %195 = vmatprep.subr.mxu0 0.0
    %196 = vmatpush1.msra.mxu0 0.0
    %197 = vmatprep.subr.mxu0 0.0
    %198 = vmatpush1.msra.mxu0 0.0
    %199 = vmatprep.subr.mxu0 0.0
    %200 = vmatpush1.msra.mxu0 0.0
    %201 = vmatprep.subr.mxu0 0.0
    %202 = vmatpush1.msra.mxu0 0.0
    %203 = vmatprep.subr.mxu0 0.0
    %204 = vmatpush1.msra.mxu0 0.0
    %205 = vmatprep.subr.mxu0 0.0
    %206 = vmatpush1.msra.mxu0 0.0
    %207 = vmatprep.subr.mxu0 0.0
    %208 = vmatpush1.msra.mxu0 0.0
    %209 = vmatprep.subr.mxu0 0.0
    %210 = vmatpush1.msra.mxu0 0.0
    %211 = vmatprep.subr.mxu0 0.0
    %212 = vmatpush1.msra.mxu0 0.0
    %213 = vmatprep.subr.mxu0 0.0
    %214 = vmatpush1.msra.mxu0 0.0
    %215 = vmatprep.subr.mxu0 0.0
    %216 = vmatpush1.msra.mxu0 0.0
    %217 = vmatprep.subr.mxu0 0.0
    %218 = vmatpush1.msra.mxu0 0.0
    %219 = vmatprep.mubr.f32.mxu0 0.0
    %220 = vmatmul.mubr.f32.gmra.mrb[0].mxu0 %v64
    %v221 = vpop.f32.mrb[0].mxu0
    %v222 = vadd.f32 %v58, %v221
    %v223 = vpop.f32.mrb[0].mxu0
    %v224 = vadd.f32 %v58, %v223
    %225 = vdwg.mxu0
    %v228 = vcombine.low %v222, %v224
    %s230 = scalar_lea.vmem [#allocation8], 8
    %231 = vst [vmem:[%s230] sm:$0x77] %v228
    // Predicated region
    $region26: #{outconv.1} parent=1 // pred_check
      _
    $region27: #{outconv.1} parent=1 // pred_check_branch
      %233 = sbr.rel (0) target = $region29
    $region28: #{outconv.1} parent=1 // pred_region
      %s235 = ssub.s32 256, 256
      %236 = vsyncadd [#allocation4], %s235
      %s237 = sshll.u32 [#allocation8], 4
      %s238 = int_to_ptr.vmem [resolvable:$true] %s237
      %243 = dma.vmem_to_hbm [thread:$0]  %s238, 256, %s3, [#allocation4], 128, 128, 8
    $region29: #{outconv.1} parent=1 // pred_fallthru
      _
    // Predicated region
    $region30: #{outconv.1} parent=1 // pred_check
      _
    $region31: #{outconv.1} parent=1 // pred_check_branch
      %245 = sbr.rel (0) target = $region33
    $region32: #{outconv.1} parent=1 // pred_region
      %246 = dma.done [#allocation4], 256
    $region33: #{outconv.1} parent=1 // pred_fallthru
      _
    %247 = vsyncpa [#allocation3], 1
    %248 = vsyncpa [#allocation6], 1
    %249 = vsyncpa [#allocation4], 1

</llo_original>
